<compile_context>
chip_gen: v7x
topology: tpu7x:2x2x1
jax: 0.10.0
libtpu: 0.0.40
codegen_flags: <defaults>
</compile_context>

<pallas_src>
import functools

import jax
import jax.numpy as jnp
from jax.experimental import pallas as pl
from jax.experimental.pallas import tpu as pltpu


# ----------------------------- glue (plain JAX) ------------------------------

def pixel_shuffle(x, r):
    # (N, C*r*r, H, W) -> (N, C, H*r, W*r), matches torch.nn.PixelShuffle
    N, Crr, H, W = x.shape
    C = Crr // (r * r)
    x = x.reshape(N, C, r, r, H, W)
    x = x.transpose(0, 1, 4, 2, 5, 3)          # N, C, H, r, W, r
    return x.reshape(N, C, H * r, W * r)


def pixel_unshuffle(x, r):
    # (N, C, H*r, W*r) -> (N, C*r*r, H, W), matches torch.nn.PixelUnshuffle
    N, C, Hr, Wr = x.shape
    H, W = Hr // r, Wr // r
    x = x.reshape(N, C, H, r, W, r)
    x = x.transpose(0, 1, 3, 5, 2, 4)          # N, C, r, r, H, W
    return x.reshape(N, C * r * r, H, W)


# ------------------------------- Pallas kernel --------------------------------

def injector_kernel(w_ref, x_ref, aty_ref, out_ref, *, C, rr):
    """One (batch-block, spatial-tile) step, all in unshuffled NCHW layout.

    w_ref  : SMEM (4*C,) f32, packed [wf | w01 | w2 | bi_eff]
             wf[c]     : f2i weight for shuffle-group c
             w01[c]    : i2f weight (input 0 + input 1) for output group c
             w2[c]     : i2f weight (input 2 == ATy) for output group c
             bi_eff[c] : i2f bias + f2i bias * w01[c]
    x_ref  : VMEM (Bn, C*rr, TS)  x_in slab (channels x spatial-lanes)
    aty_ref: VMEM (Bn, rr, TS)    pixel-unshuffled ATy slab
    out_ref: VMEM (Bn, C*rr, TS)
    """
    aty = aty_ref[...].astype(jnp.float32)                      # (Bn, rr, TS)

    # f2i 1x1 conv with the pixel-shuffle folded in:
    #   s[:, q, :] = sum_c x[:, c*rr + q, :] * wf[c]   (bias folded into bi_eff)
    # C-deep contraction -> unrolled scalar-broadcast VPU FMA chain (no MXU/XLU).
    s = x_ref[:, 0:rr, :].astype(jnp.float32) * w_ref[0]
    for c in range(1, C):
        s = s + x_ref[:, c * rr:(c + 1) * rr, :].astype(jnp.float32) * w_ref[c]

    # i2f 1x1 conv over cat([s, s, ATy]) + residual, streamed per shuffle-group so
    # only one (Bn, rr, TS) row block is live at a time (no concatenate, per-group
    # stores straight to out_ref).
    for c in range(C):
        y2 = s * w_ref[C + c] + aty * w_ref[2 * C + c] + w_ref[3 * C + c]
        xg = x_ref[:, c * rr:(c + 1) * rr, :].astype(jnp.float32)
        out_ref[:, c * rr:(c + 1) * rr, :] = (xg + y2).astype(out_ref.dtype)


# --------------------------------- tiling --------------------------------------

_BLOCK_BUDGET = 20 * 1024 * 1024     # double-buffered streaming blocks; safe on v7x (64 MiB)
_MIN_STEP_BYTES = 1 * 1024 * 1024    # amortize ~0.35 us per grid step
_VMEM_LIMIT = 48 * 1024 * 1024       # scoped VMEM limit (< v7x physical, << v5e/v6e physical)


def _choose_tiling(N, nf, rr, S, itemsize):
    """Pick (Bn, TS): batch rows per block and spatial lane tile."""
    # Double-buffered VMEM bytes per (batch-row, lane): x + out + aty.
    bytes_per_lane = 2 * (2 * nf + rr) * itemsize
    max_lanes = max(128, (_BLOCK_BUDGET // bytes_per_lane) // 128 * 128)
    s128 = -(-S // 128) * 128

    if s128 <= max_lanes:
        TS = S                        # one full-extent spatial block (always legal)
    else:
        TS = max_lanes                # 128-multiple tile; final block is partial (masked)

    # Batch widening: amortize per-grid-step overhead when a single-row step is tiny.
    Bn = 1
    step_bytes = (2 * nf + rr) * TS * itemsize
    if N > 1 and step_bytes < _MIN_STEP_BYTES:
        cap = max(1, _BLOCK_BUDGET // (bytes_per_lane * TS))
        want = min(N, cap, max(1, -(-_MIN_STEP_BYTES // step_bytes)))
        for cand in range(int(want), 0, -1):
            if N % cand == 0:
                Bn = cand
                break

    # Megacore (v7x): if all the work landed in one grid step but the payload is big,
    # split the spatial axis in two so both TensorCores get work.
    n_blocks = (N // Bn) * (-(-S // TS))
    if n_blocks == 1 and S > 256:
        if Bn * (2 * nf + rr) * TS * itemsize >= 2 * _MIN_STEP_BYTES:
            half = -(-S // 2)
            TS = -(-half // 128) * 128

    return Bn, TS


# --------------------------------- wrapper ------------------------------------

@functools.partial(jax.jit, static_argnames=("t", "r"))
def injector_forward(x_in, ATy, params, t, r):
    N, nf, H, W = x_in.shape
    rr = r * r
    C = nf // rr
    S = H * W
    itemsize = jnp.dtype(x_in.dtype).itemsize

    # --- fold step-t weights (t is 1-based, like the PyTorch forward) ----------
    wf = params["f2i_w"][t - 1].reshape(C).astype(jnp.float32)        # Conv2d(C,1,1)
    bf = params["f2i_b"][t - 1].reshape(()).astype(jnp.float32)
    wi = params["i2f_w"][t - 1].reshape(C, 3).astype(jnp.float32)     # Conv2d(3,C,1)
    bi = params["i2f_b"][t - 1].reshape(C).astype(jnp.float32)

    w01 = wi[:, 0] + wi[:, 1]              # A = AT = identity -> s appears twice
    w2 = wi[:, 2]
    bi_eff = bi + bf * w01                 # fold f2i bias into i2f bias
    wpack = jnp.concatenate([wf, w01, w2, bi_eff])                    # (4*C,)

    # --- lane-dense operands in native NCHW (spatial flattened into lanes) -----
    x3 = x_in.reshape(N, nf, S)                                       # free view
    aty_u = pixel_unshuffle(ATy, r).reshape(N, rr, S)                 # tiny tensor

    Bn, TS = _choose_tiling(N, nf, rr, S, itemsize)
    grid = (N // Bn, pl.cdiv(S, TS))

    cost = pl.CostEstimate(
        flops=int(7 * N * nf * S),
        transcendentals=0,
        bytes_accessed=int(itemsize * N * (2 * nf + rr) * S + 16 * C),
    )

    out3 = pl.pallas_call(
        functools.partial(injector_kernel, C=C, rr=rr),
        out_shape=jax.ShapeDtypeStruct((N, nf, S), x_in.dtype),
        grid_spec=pltpu.PrefetchScalarGridSpec(
            num_scalar_prefetch=0,
            grid=grid,
            in_specs=[
                pl.BlockSpec(memory_space=pltpu.MemorySpace.SMEM),       # packed weights
                pl.BlockSpec((Bn, nf, TS), lambda n, j: (n, 0, j)),      # x slab
                pl.BlockSpec((Bn, rr, TS), lambda n, j: (n, 0, j)),      # ATy slab
            ],
            out_specs=pl.BlockSpec((Bn, nf, TS), lambda n, j: (n, 0, j)),
        ),
        compiler_params=pltpu.CompilerParams(
            dimension_semantics=("parallel", "parallel"),
            vmem_limit_bytes=_VMEM_LIMIT),
        cost_estimate=cost,
    )(wpack, x3, aty_u)

    return out3.reshape(N, nf, H, W)


# --------------------------- pure-JAX reference --------------------------------

def injector_reference(x_in, ATy, params, t, r):
    N, nf, H, W = x_in.shape
    C = nf // (r * r)
    wf = params["f2i_w"][t - 1].reshape(1, C)
    bf = params["f2i_b"][t - 1].reshape(1,)
    wi = params["i2f_w"][t - 1].reshape(C, 3)
    bi = params["i2f_b"][t - 1].reshape(C,)

    y1 = pixel_shuffle(x_in, r)
    s = jnp.einsum("nchw,oc->nohw", y1, wf) + bf.reshape(1, 1, 1, 1)
    cat = jnp.concatenate([s, s, ATy], axis=1)          # A = AT = identity
    y2 = jnp.einsum("nchw,oc->nohw", cat, wi) + bi.reshape(1, C, 1, 1)
    return x_in + pixel_unshuffle(y2, r)


# ----------------------------------- main --------------------------------------

if __name__ == "__main__":
    # Module hyperparameters
    nf, r, T = 16, 2, 2
    t = 1                       # which step's conv pair to use (1-based)
    N, H, W = 2, 16, 16
    C = nf // (r * r)
    Hr, Wr = H * r, W * r

    key = jax.random.PRNGKey(0)
    k = jax.random.split(key, 6)

    x_in = jax.random.normal(k[0], (N, nf, H, W), jnp.float32)
    ATy = jax.random.normal(k[1], (N, 1, Hr, Wr), jnp.float32)

    # Deterministic synthetic parameters (Conv2d 1x1 weight/bias shapes, all T steps)
    params = {
        "f2i_w": 0.1 * jax.random.normal(k[2], (T, 1, C, 1, 1), jnp.float32),
        "f2i_b": 0.1 * jax.random.normal(k[3], (T, 1), jnp.float32),
        "i2f_w": 0.1 * jax.random.normal(k[4], (T, C, 3, 1, 1), jnp.float32),
        "i2f_b": 0.1 * jax.random.normal(k[5], (T, C), jnp.float32),
    }

    out = injector_forward(x_in, ATy, params, t=t, r=r)
    out = jax.block_until_ready(out)

    ref = injector_reference(x_in, ATy, params, t, r)
    assert out.shape == x_in.shape and out.dtype == x_in.dtype
    assert jnp.allclose(out, ref, atol=1e-5, rtol=1e-5), "mismatch vs reference"

    print("KERNEL_OK")
</pallas_src>

<mosaic_0001>
module attributes {stable_mosaic.version = 11 : i64} {
  func.func @injector_kernel(%arg0: i32, %arg1: i32, %arg2: memref<16xf32, #tpu.memory_space<smem>>, %arg3: memref<2x16x256xf32, #tpu.memory_space<vmem>>, %arg4: memref<2x4x256xf32, #tpu.memory_space<vmem>>, %arg5: memref<2x16x256xf32, #tpu.memory_space<vmem>>) attributes {dimension_semantics = [#tpu.dimension_semantics<parallel>, #tpu.dimension_semantics<parallel>], iteration_bounds = array<i64: 1, 1>, scalar_prefetch = 0 : i64, scratch_operands = 0 : i64, tpu.core_type = #tpu.core_type<tc>, window_params = [{transform_indices = @transform_0, window_bounds = array<i64: 16>}, {transform_indices = @transform_1, window_bounds = array<i64: 2, 16, 256>}, {transform_indices = @transform_2, window_bounds = array<i64: 2, 4, 256>}, {transform_indices = @transform_3, window_bounds = array<i64: 2, 16, 256>}]} {
    %c0 = arith.constant 0 : index
    %c0_0 = arith.constant 0 : index
    %c0_1 = arith.constant 0 : index
    %0 = vector.load %arg4[%c0, %c0_0, %c0_1] : memref<2x4x256xf32, #tpu.memory_space<vmem>>, vector<2x4x256xf32>
    %c0_2 = arith.constant 0 : index
    %c0_3 = arith.constant 0 : index
    %c0_4 = arith.constant 0 : index
    %1 = vector.load %arg3[%c0_2, %c0_3, %c0_4] : memref<2x16x256xf32, #tpu.memory_space<vmem>>, vector<2x4x256xf32>
    %c0_5 = arith.constant 0 : index
    %2 = memref.load %arg2[%c0_5] : memref<16xf32, #tpu.memory_space<smem>>
    %3 = vector.broadcast %2 : f32 to vector<2x4x256xf32>
    %4 = arith.mulf %1, %3 : vector<2x4x256xf32>
    %c0_6 = arith.constant 0 : index
    %c4 = arith.constant 4 : index
    %c0_7 = arith.constant 0 : index
    %5 = vector.load %arg3[%c0_6, %c4, %c0_7] : memref<2x16x256xf32, #tpu.memory_space<vmem>>, vector<2x4x256xf32>
    %c1 = arith.constant 1 : index
    %6 = memref.load %arg2[%c1] : memref<16xf32, #tpu.memory_space<smem>>
    %7 = vector.broadcast %6 : f32 to vector<2x4x256xf32>
    %8 = arith.mulf %5, %7 : vector<2x4x256xf32>
    %9 = arith.addf %4, %8 : vector<2x4x256xf32>
    %c0_8 = arith.constant 0 : index
    %c8 = arith.constant 8 : index
    %c0_9 = arith.constant 0 : index
    %10 = vector.load %arg3[%c0_8, %c8, %c0_9] : memref<2x16x256xf32, #tpu.memory_space<vmem>>, vector<2x4x256xf32>
    %c2 = arith.constant 2 : index
    %11 = memref.load %arg2[%c2] : memref<16xf32, #tpu.memory_space<smem>>
    %12 = vector.broadcast %11 : f32 to vector<2x4x256xf32>
    %13 = arith.mulf %10, %12 : vector<2x4x256xf32>
    %14 = arith.addf %9, %13 : vector<2x4x256xf32>
    %c0_10 = arith.constant 0 : index
    %c12 = arith.constant 12 : index
    %c0_11 = arith.constant 0 : index
    %15 = vector.load %arg3[%c0_10, %c12, %c0_11] : memref<2x16x256xf32, #tpu.memory_space<vmem>>, vector<2x4x256xf32>
    %c3 = arith.constant 3 : index
    %16 = memref.load %arg2[%c3] : memref<16xf32, #tpu.memory_space<smem>>
    %17 = vector.broadcast %16 : f32 to vector<2x4x256xf32>
    %18 = arith.mulf %15, %17 : vector<2x4x256xf32>
    %19 = arith.addf %14, %18 : vector<2x4x256xf32>
    %c4_12 = arith.constant 4 : index
    %20 = memref.load %arg2[%c4_12] : memref<16xf32, #tpu.memory_space<smem>>
    %21 = vector.broadcast %20 : f32 to vector<2x4x256xf32>
    %22 = arith.mulf %19, %21 : vector<2x4x256xf32>
    %c8_13 = arith.constant 8 : index
    %23 = memref.load %arg2[%c8_13] : memref<16xf32, #tpu.memory_space<smem>>
    %24 = vector.broadcast %23 : f32 to vector<2x4x256xf32>
    %25 = arith.mulf %0, %24 : vector<2x4x256xf32>
    %26 = arith.addf %22, %25 : vector<2x4x256xf32>
    %c12_14 = arith.constant 12 : index
    %27 = memref.load %arg2[%c12_14] : memref<16xf32, #tpu.memory_space<smem>>
    %28 = vector.broadcast %27 : f32 to vector<2x4x256xf32>
    %29 = arith.addf %26, %28 : vector<2x4x256xf32>
    %c0_15 = arith.constant 0 : index
    %c0_16 = arith.constant 0 : index
    %c0_17 = arith.constant 0 : index
    %30 = vector.load %arg3[%c0_15, %c0_16, %c0_17] : memref<2x16x256xf32, #tpu.memory_space<vmem>>, vector<2x4x256xf32>
    %31 = arith.addf %30, %29 : vector<2x4x256xf32>
    %c0_18 = arith.constant 0 : index
    %c0_19 = arith.constant 0 : index
    %c0_20 = arith.constant 0 : index
    %32 = vector.load %arg5[%c0_18, %c0_19, %c0_20] : memref<2x16x256xf32, #tpu.memory_space<vmem>>, vector<2x4x256xf32>
    tpu.vector_store %arg5[%c0_18, %c0_19, %c0_20], %31 {strides = array<i32>} : memref<2x16x256xf32, #tpu.memory_space<vmem>>, vector<2x4x256xf32>,
    %c5 = arith.constant 5 : index
    %33 = memref.load %arg2[%c5] : memref<16xf32, #tpu.memory_space<smem>>
    %34 = vector.broadcast %33 : f32 to vector<2x4x256xf32>
    %35 = arith.mulf %19, %34 : vector<2x4x256xf32>
    %c9 = arith.constant 9 : index
    %36 = memref.load %arg2[%c9] : memref<16xf32, #tpu.memory_space<smem>>
    %37 = vector.broadcast %36 : f32 to vector<2x4x256xf32>
    %38 = arith.mulf %0, %37 : vector<2x4x256xf32>
    %39 = arith.addf %35, %38 : vector<2x4x256xf32>
    %c13 = arith.constant 13 : index
    %40 = memref.load %arg2[%c13] : memref<16xf32, #tpu.memory_space<smem>>
    %41 = vector.broadcast %40 : f32 to vector<2x4x256xf32>
    %42 = arith.addf %39, %41 : vector<2x4x256xf32>
    %c0_21 = arith.constant 0 : index
    %c4_22 = arith.constant 4 : index
    %c0_23 = arith.constant 0 : index
    %43 = vector.load %arg3[%c0_21, %c4_22, %c0_23] : memref<2x16x256xf32, #tpu.memory_space<vmem>>, vector<2x4x256xf32>
    %44 = arith.addf %43, %42 : vector<2x4x256xf32>
    %c0_24 = arith.constant 0 : index
    %c4_25 = arith.constant 4 : index
    %c0_26 = arith.constant 0 : index
    %45 = vector.load %arg5[%c0_24, %c4_25, %c0_26] : memref<2x16x256xf32, #tpu.memory_space<vmem>>, vector<2x4x256xf32>
    tpu.vector_store %arg5[%c0_24, %c4_25, %c0_26], %44 {strides = array<i32>} : memref<2x16x256xf32, #tpu.memory_space<vmem>>, vector<2x4x256xf32>,
    %c6 = arith.constant 6 : index
    %46 = memref.load %arg2[%c6] : memref<16xf32, #tpu.memory_space<smem>>
    %47 = vector.broadcast %46 : f32 to vector<2x4x256xf32>
    %48 = arith.mulf %19, %47 : vector<2x4x256xf32>
    %c10 = arith.constant 10 : index
    %49 = memref.load %arg2[%c10] : memref<16xf32, #tpu.memory_space<smem>>
    %50 = vector.broadcast %49 : f32 to vector<2x4x256xf32>
    %51 = arith.mulf %0, %50 : vector<2x4x256xf32>
    %52 = arith.addf %48, %51 : vector<2x4x256xf32>
    %c14 = arith.constant 14 : index
    %53 = memref.load %arg2[%c14] : memref<16xf32, #tpu.memory_space<smem>>
    %54 = vector.broadcast %53 : f32 to vector<2x4x256xf32>
    %55 = arith.addf %52, %54 : vector<2x4x256xf32>
    %c0_27 = arith.constant 0 : index
    %c8_28 = arith.constant 8 : index
    %c0_29 = arith.constant 0 : index
    %56 = vector.load %arg3[%c0_27, %c8_28, %c0_29] : memref<2x16x256xf32, #tpu.memory_space<vmem>>, vector<2x4x256xf32>
    %57 = arith.addf %56, %55 : vector<2x4x256xf32>
    %c0_30 = arith.constant 0 : index
    %c8_31 = arith.constant 8 : index
    %c0_32 = arith.constant 0 : index
    %58 = vector.load %arg5[%c0_30, %c8_31, %c0_32] : memref<2x16x256xf32, #tpu.memory_space<vmem>>, vector<2x4x256xf32>
    tpu.vector_store %arg5[%c0_30, %c8_31, %c0_32], %57 {strides = array<i32>} : memref<2x16x256xf32, #tpu.memory_space<vmem>>, vector<2x4x256xf32>,
    %c7 = arith.constant 7 : index
    %59 = memref.load %arg2[%c7] : memref<16xf32, #tpu.memory_space<smem>>
    %60 = vector.broadcast %59 : f32 to vector<2x4x256xf32>
    %61 = arith.mulf %19, %60 : vector<2x4x256xf32>
    %c11 = arith.constant 11 : index
    %62 = memref.load %arg2[%c11] : memref<16xf32, #tpu.memory_space<smem>>
    %63 = vector.broadcast %62 : f32 to vector<2x4x256xf32>
    %64 = arith.mulf %0, %63 : vector<2x4x256xf32>
    %65 = arith.addf %61, %64 : vector<2x4x256xf32>
    %c15 = arith.constant 15 : index
    %66 = memref.load %arg2[%c15] : memref<16xf32, #tpu.memory_space<smem>>
    %67 = vector.broadcast %66 : f32 to vector<2x4x256xf32>
    %68 = arith.addf %65, %67 : vector<2x4x256xf32>
    %c0_33 = arith.constant 0 : index
    %c12_34 = arith.constant 12 : index
    %c0_35 = arith.constant 0 : index
    %69 = vector.load %arg3[%c0_33, %c12_34, %c0_35] : memref<2x16x256xf32, #tpu.memory_space<vmem>>, vector<2x4x256xf32>
    %70 = arith.addf %69, %68 : vector<2x4x256xf32>
    %c0_36 = arith.constant 0 : index
    %c12_37 = arith.constant 12 : index
    %c0_38 = arith.constant 0 : index
    %71 = vector.load %arg5[%c0_36, %c12_37, %c0_38] : memref<2x16x256xf32, #tpu.memory_space<vmem>>, vector<2x4x256xf32>
    tpu.vector_store %arg5[%c0_36, %c12_37, %c0_38], %70 {strides = array<i32>} : memref<2x16x256xf32, #tpu.memory_space<vmem>>, vector<2x4x256xf32>,
    return
  }
  func.func @transform_0(%arg0: i32, %arg1: i32) -> i32 {
    %c0_i32 = arith.constant 0 : i32
    %c0_i32_0 = arith.constant 0 : i32
    return %c0_i32 : i32
  }
  func.func @transform_1(%arg0: i32, %arg1: i32) -> (i32, i32, i32) {
    %c0_i32 = arith.constant 0 : i32
    %c0_i32_0 = arith.constant 0 : i32
    return %arg0, %c0_i32, %arg1 : i32, i32, i32
  }
  func.func @transform_2(%arg0: i32, %arg1: i32) -> (i32, i32, i32) {
    %c0_i32 = arith.constant 0 : i32
    %c0_i32_0 = arith.constant 0 : i32
    return %arg0, %c0_i32, %arg1 : i32, i32, i32
  }
  func.func @transform_3(%arg0: i32, %arg1: i32) -> (i32, i32, i32) {
    %c0_i32 = arith.constant 0 : i32
    %c0_i32_0 = arith.constant 0 : i32
    return %arg0, %c0_i32, %arg1 : i32, i32, i32
  }
}

</mosaic_0001>

<llo_original>
// kernel: injector_forward.1
$region0: #{injector_forward.1}
  #allocation0 [shape = 'u32[]', space=smem, size = 0x4, offset = 0x4, fixed_abs, tag = 'smem constant byte address 0x4 - core index']
  #allocation1 [shape = 'u32[144,128]{1,0:T(1,128)}', space=vmem, size = 0x12000, scoped, tag = 'internal scratch']
  %s0 = inlined_call_operand.vmem [shape: f32[16], index: 0, kind: input, shape index: {}]
  %s1 = inlined_call_operand.vmem [shape: f32[2,16,256], index: 1, kind: input, shape index: {}]
  %s2 = inlined_call_operand.vmem [shape: f32[2,4,256], index: 2, kind: input, shape index: {}]
  %s3 = inlined_call_operand.vmem [shape: f32[2,16,256], index: 3, kind: output, shape index: {}]
  %s4 = sld [smem:[#allocation0]]
  $region26: #{injector_forward.1} parent=0
    _
  %s6 = ssub.s32 1, %s4
  %s7 = scalar_select 0, %s6, %s4
  $region1: #{injector_forward.1} parent=0
    #allocation2 [shape = 'u8[512]{0}', space=smem, size = 0x200, scoped, tag = 'input window, operand 0, single buffered']
    #allocation3 [shape = 's32[1]{0}', space=sflag, size = 0x4, scoped, tag = 'scoped memory for injector_forward.1']
    %8 = vsyncpa [#allocation3], 0
    // Predicated region
    $region2: #{injector_forward.1} parent=1 // pred_check
      _
    $region3: #{injector_forward.1} parent=1 // pred_check_branch
      %10 = sbr.rel (0) target = $region5
    $region4: #{injector_forward.1} parent=1 // pred_region
      %s12 = ssub.s32 16, 16
      %13 = vsyncadd [#allocation3], %s12
      %s15 = sshll.u32 %s0, 4
      %s16 = int_to_ptr.vmem [resolvable:$true] %s15
      %18 = dma.vmem_to_smem %s16, 16, [#allocation2], [#allocation3]
    $region5: #{injector_forward.1} parent=1 // pred_fallthru
      _
    // Predicated region
    $region6: #{injector_forward.1} parent=1 // pred_check
      _
    $region7: #{injector_forward.1} parent=1 // pred_check_branch
      %20 = sbr.rel (0) target = $region9
    $region8: #{injector_forward.1} parent=1 // pred_region
      _
    $region9: #{injector_forward.1} parent=1 // pred_fallthru
      _
    // Predicated region
    $region10: #{injector_forward.1} parent=1 // pred_check
      _
    $region11: #{injector_forward.1} parent=1 // pred_check_branch
      %22 = sbr.rel (0) target = $region13
    $region12: #{injector_forward.1} parent=1 // pred_region
      _
    $region13: #{injector_forward.1} parent=1 // pred_fallthru
      _
    // Predicated region
    $region14: #{injector_forward.1} parent=1 // pred_check
      _
    $region15: #{injector_forward.1} parent=1 // pred_check_branch
      %24 = sbr.rel (0) target = $region17
    $region16: #{injector_forward.1} parent=1 // pred_region
      %25 = dma.done [#allocation3], 16
    $region17: #{injector_forward.1} parent=1 // pred_fallthru
      _
    %26 = sfence
    %v27 = vld [vmem:[%s2] sm:$0xff]
    %v28 = vld [vmem:[%s2 + $0x8] sm:$0xff]
    %v29 = vld [vmem:[%s1] sm:$0xf]
    %v30 = vld [vmem:[%s1 + $0x8] sm:$0xf]
    %v31 = vld [vmem:[%s1 + $0x20] sm:$0xf]
    %v32 = vld [vmem:[%s1 + $0x28] sm:$0xf]
    %s33 = sld [smem:[#allocation2]]
    %v34 = vstv %s33
    %v35 = vmul.f32 %v29, %v34
    %v36 = vmul.f32 %v30, %v34
    %v37 = vmul.f32 %v31, %v34
    %v38 = vmul.f32 %v32, %v34
    %v39 = vld [vmem:[%s1] sm:$0xf0]
    %v40 = vld [vmem:[%s1 + $0x8] sm:$0xf0]
    %v41 = vld [vmem:[%s1 + $0x20] sm:$0xf0]
    %v42 = vld [vmem:[%s1 + $0x28] sm:$0xf0]
    %s43 = sld [smem:[#allocation2 + $0x1]]
    %v44 = vstv %s43
    %v45 = vmul.f32 %v39, %v44
    %v46 = vmul.f32 %v40, %v44
    %v47 = vmul.f32 %v41, %v44
    %v48 = vmul.f32 %v42, %v44
    %v53 = vrot.slane %v45, 4
    %v54 = vrot.slane %v46, 4
    %v55 = vrot.slane %v47, 4
    %v56 = vrot.slane %v48, 4
    %v61 = vadd.f32 %v35, %v53
    %v62 = vadd.f32 %v36, %v54
    %v63 = vadd.f32 %v37, %v55
    %v64 = vadd.f32 %v38, %v56
    %v65 = vld [vmem:[%s1 + $0x10] sm:$0xf]
    %v66 = vld [vmem:[%s1 + $0x18] sm:$0xf]
    %v67 = vld [vmem:[%s1 + $0x30] sm:$0xf]
    %v68 = vld [vmem:[%s1 + $0x38] sm:$0xf]
    %s69 = sld [smem:[#allocation2 + $0x2]]
    %v70 = vstv %s69
    %v71 = vmul.f32 %v65, %v70
    %v72 = vmul.f32 %v66, %v70
    %v73 = vmul.f32 %v67, %v70
    %v74 = vmul.f32 %v68, %v70
    %v75 = vadd.f32 %v61, %v71
    %v76 = vadd.f32 %v62, %v72
    %v77 = vadd.f32 %v63, %v73
    %v78 = vadd.f32 %v64, %v74
    %v79 = vld [vmem:[%s1 + $0x10] sm:$0xf0]
    %v80 = vld [vmem:[%s1 + $0x18] sm:$0xf0]
    %v81 = vld [vmem:[%s1 + $0x30] sm:$0xf0]
    %v82 = vld [vmem:[%s1 + $0x38] sm:$0xf0]
    %s83 = sld [smem:[#allocation2 + $0x3]]
    %v84 = vstv %s83
    %v85 = vmul.f32 %v79, %v84
    %v86 = vmul.f32 %v80, %v84
    %v87 = vmul.f32 %v81, %v84
    %v88 = vmul.f32 %v82, %v84
    %v93 = vrot.slane %v85, 4
    %v94 = vrot.slane %v86, 4
    %v95 = vrot.slane %v87, 4
    %v96 = vrot.slane %v88, 4
    %v101 = vadd.f32 %v75, %v93
    %v102 = vadd.f32 %v76, %v94
    %v103 = vadd.f32 %v77, %v95
    %v104 = vadd.f32 %v78, %v96
    %s105 = sld [smem:[#allocation2 + $0x4]]
    %v106 = vstv %s105
    %v107 = vmul.f32 %v101, %v106
    %v108 = vmul.f32 %v102, %v106
    %v109 = vmul.f32 %v103, %v106
    %v110 = vmul.f32 %v104, %v106
    %s111 = sld [smem:[#allocation2 + $0x8]]
    %v112 = vstv %s111
    %v113 = vmul.f32 %v27, %v112
    %v114 = vmul.f32 %v28, %v112
    %v117 = vcombine.high %v113, %v113
    %v118 = vcombine.high %v114, %v114
    %v121 = vadd.f32 %v107, %v113
    %v122 = vadd.f32 %v108, %v117
    %v123 = vadd.f32 %v109, %v114
    %v124 = vadd.f32 %v110, %v118
    %s125 = sld [smem:[#allocation2 + $0xc]]
    %v126 = vstv %s125
    %v127 = vadd.f32 %v121, %v126
    %v128 = vadd.f32 %v122, %v126
    %v129 = vadd.f32 %v123, %v126
    %v130 = vadd.f32 %v124, %v126
    %v131 = vadd.f32 %v29, %v127
    %v132 = vadd.f32 %v30, %v128
    %v133 = vadd.f32 %v31, %v129
    %v134 = vadd.f32 %v32, %v130
    %135 = vst [vmem:[%s3] sm:$0xf] %v131
    %136 = vst [vmem:[%s3 + $0x8] sm:$0xf] %v132
    %137 = vst [vmem:[%s3 + $0x20] sm:$0xf] %v133
    %138 = vst [vmem:[%s3 + $0x28] sm:$0xf] %v134
    %s139 = sld [smem:[#allocation2 + $0x5]]
    %v140 = vstv %s139
    %v141 = vmul.f32 %v101, %v140
    %v142 = vmul.f32 %v102, %v140
    %v143 = vmul.f32 %v103, %v140
    %v144 = vmul.f32 %v104, %v140
    %s145 = sld [smem:[#allocation2 + $0x9]]
    %v146 = vstv %s145
    %v147 = vmul.f32 %v27, %v146
    %v148 = vmul.f32 %v28, %v146
    %v151 = vcombine.high %v147, %v147
    %v152 = vcombine.high %v148, %v148
    %v155 = vadd.f32 %v141, %v147
    %v156 = vadd.f32 %v142, %v151
    %v157 = vadd.f32 %v143, %v148
    %v158 = vadd.f32 %v144, %v152
    %s159 = sld [smem:[#allocation2 + $0xd]]
    %v160 = vstv %s159
    %v161 = vadd.f32 %v155, %v160
    %v162 = vadd.f32 %v156, %v160
    %v163 = vadd.f32 %v157, %v160
    %v164 = vadd.f32 %v158, %v160
    %v165 = vld [vmem:[%s1] sm:$0xf0]
    %v166 = vld [vmem:[%s1 + $0x8] sm:$0xf0]
    %v167 = vld [vmem:[%s1 + $0x20] sm:$0xf0]
    %v168 = vld [vmem:[%s1 + $0x28] sm:$0xf0]
    %v173 = vrot.slane %v161, 4
    %v174 = vrot.slane %v162, 4
    %v175 = vrot.slane %v163, 4
    %v176 = vrot.slane %v164, 4
    %v181 = vadd.f32 %v165, %v173
    %v182 = vadd.f32 %v166, %v174
    %v183 = vadd.f32 %v167, %v175
    %v184 = vadd.f32 %v168, %v176
    %185 = vst [vmem:[%s3] sm:$0xf0] %v181
    %186 = vst [vmem:[%s3 + $0x8] sm:$0xf0] %v182
    %187 = vst [vmem:[%s3 + $0x20] sm:$0xf0] %v183
    %188 = vst [vmem:[%s3 + $0x28] sm:$0xf0] %v184
    %s189 = sld [smem:[#allocation2 + $0x6]]
    %v190 = vstv %s189
    %v191 = vmul.f32 %v101, %v190
    %v192 = vmul.f32 %v102, %v190
    %v193 = vmul.f32 %v103, %v190
    %v194 = vmul.f32 %v104, %v190
    %s195 = sld [smem:[#allocation2 + $0xa]]
    %v196 = vstv %s195
    %v197 = vmul.f32 %v27, %v196
    %v198 = vmul.f32 %v28, %v196
    %v201 = vcombine.high %v197, %v197
    %v202 = vcombine.high %v198, %v198
    %v205 = vadd.f32 %v191, %v197
    %v206 = vadd.f32 %v192, %v201
    %v207 = vadd.f32 %v193, %v198
    %v208 = vadd.f32 %v194, %v202
    %s209 = sld [smem:[#allocation2 + $0xe]]
    %v210 = vstv %s209
    %v211 = vadd.f32 %v205, %v210
    %v212 = vadd.f32 %v206, %v210
    %v213 = vadd.f32 %v207, %v210
    %v214 = vadd.f32 %v208, %v210
    %v215 = vld [vmem:[%s1 + $0x10] sm:$0xf]
    %v216 = vld [vmem:[%s1 + $0x18] sm:$0xf]
    %v217 = vld [vmem:[%s1 + $0x30] sm:$0xf]
    %v218 = vld [vmem:[%s1 + $0x38] sm:$0xf]
    %v219 = vadd.f32 %v215, %v211
    %v220 = vadd.f32 %v216, %v212
    %v221 = vadd.f32 %v217, %v213
    %v222 = vadd.f32 %v218, %v214
    %223 = vst [vmem:[%s3 + $0x10] sm:$0xf] %v219
    %224 = vst [vmem:[%s3 + $0x18] sm:$0xf] %v220
    %225 = vst [vmem:[%s3 + $0x30] sm:$0xf] %v221
    %226 = vst [vmem:[%s3 + $0x38] sm:$0xf] %v222
    %s227 = sld [smem:[#allocation2 + $0x7]]
    %v228 = vstv %s227
    %v229 = vmul.f32 %v101, %v228
    %v230 = vmul.f32 %v102, %v228
    %v231 = vmul.f32 %v103, %v228
    %v232 = vmul.f32 %v104, %v228
    %s233 = sld [smem:[#allocation2 + $0xb]]
    %v234 = vstv %s233
    %v235 = vmul.f32 %v27, %v234
    %v236 = vmul.f32 %v28, %v234
    %v239 = vcombine.high %v235, %v235
    %v240 = vcombine.high %v236, %v236
    %v243 = vadd.f32 %v229, %v235
    %v244 = vadd.f32 %v230, %v239
    %v245 = vadd.f32 %v231, %v236
    %v246 = vadd.f32 %v232, %v240
    %s247 = sld [smem:[#allocation2 + $0xf]]
    %v248 = vstv %s247
    %v249 = vadd.f32 %v243, %v248
    %v250 = vadd.f32 %v244, %v248
    %v251 = vadd.f32 %v245, %v248
    %v252 = vadd.f32 %v246, %v248
    %v253 = vld [vmem:[%s1 + $0x10] sm:$0xf0]
    %v254 = vld [vmem:[%s1 + $0x18] sm:$0xf0]
    %v255 = vld [vmem:[%s1 + $0x30] sm:$0xf0]
    %v256 = vld [vmem:[%s1 + $0x38] sm:$0xf0]
    %v261 = vrot.slane %v249, 4
    %v262 = vrot.slane %v250, 4
    %v263 = vrot.slane %v251, 4
    %v264 = vrot.slane %v252, 4
    %v269 = vadd.f32 %v253, %v261
    %v270 = vadd.f32 %v254, %v262
    %v271 = vadd.f32 %v255, %v263
    %v272 = vadd.f32 %v256, %v264
    %273 = vst [vmem:[%s3 + $0x10] sm:$0xf0] %v269
    %274 = vst [vmem:[%s3 + $0x18] sm:$0xf0] %v270
    %275 = vst [vmem:[%s3 + $0x30] sm:$0xf0] %v271
    %276 = vst [vmem:[%s3 + $0x38] sm:$0xf0] %v272
    // Predicated region
    $region18: #{injector_forward.1} parent=1 // pred_check
      _
    $region19: #{injector_forward.1} parent=1 // pred_check_branch
      %278 = sbr.rel (0) target = $region21
    $region20: #{injector_forward.1} parent=1 // pred_region
      _
    $region21: #{injector_forward.1} parent=1 // pred_fallthru
      _
    // Predicated region
    $region22: #{injector_forward.1} parent=1 // pred_check
      _
    $region23: #{injector_forward.1} parent=1 // pred_check_branch
      %280 = sbr.rel (0) target = $region25
    $region24: #{injector_forward.1} parent=1 // pred_region
      _
    $region25: #{injector_forward.1} parent=1 // pred_fallthru
      _
    %281 = vsyncpa [#allocation3], 1

</llo_original>
